<compile_context>
chip_gen: v7x
topology: tpu7x:2x2x1
jax: 0.10.0
libtpu: 0.0.40
codegen_flags: <defaults>
</compile_context>

<pallas_src>
import jax
import jax.numpy as jnp
from jax.experimental import pallas as pl
from jax.experimental.pallas import tpu as pltpu


def _mixing_kernel(x_ref, rt_ref, o_ref, acc_ref):
    # x_ref  : (tm, tk) bf16   rows = (batch, channel) pairs, cols = tokens (K)
    # rt_ref : (tk, tn) bf16   tile of R^T
    # o_ref  : (tm, tn) out dtype
    # acc_ref: (tm, tn) f32 VMEM accumulator (resident across the K axis)
    @pl.when(pl.program_id(2) == 0)
    def _init():
        acc_ref[...] = jnp.zeros_like(acc_ref)

    acc_ref[...] += jnp.dot(
        x_ref[...], rt_ref[...], preferred_element_type=jnp.float32
    )

    @pl.when(pl.program_id(2) == pl.num_programs(2) - 1)
    def _finalize():
        o_ref[...] = acc_ref[...].astype(o_ref.dtype)


def _pick_tile(dim, candidates):
    for c in candidates:
        if c <= dim and dim % c == 0:
            return c
    return dim  # fall back to the full dim (always legal for a BlockSpec)


def random_mixing(x, random_matrix):
    """x: (B, H, W, C); random_matrix: (N, N) with N == H*W. Returns (B,H,W,C)."""
    B, H, W, C = x.shape
    N = H * W
    assert random_matrix.shape == (N, N)

    out_dtype = x.dtype
    M = B * C

    # Layout plumbing in plain JAX (outside the kernel):
    #   x_t[(b,c), n] = x[b, n, c]   -> (M, N), tokens in the lane dim
    #   out_t = x_t @ R^T            -> (M, N)
    x_t = jnp.transpose(x.reshape(B, N, C), (0, 2, 1)).reshape(M, N)
    x_bf = x_t.astype(jnp.bfloat16)
    rt_bf = jnp.transpose(random_matrix).astype(jnp.bfloat16)  # (N, N) = R^T

    # Tile sizes: lane dims multiples of 128 (or full), sublane dims mult. of 8.
    tm = _pick_tile(M, (512, 256, 128, 64, 32, 16, 8))
    tn = _pick_tile(N, (512, 256, 128))
    tk = _pick_tile(N, (512, 256, 128))
    grid = (M // tm, N // tn, N // tk)

    # VMEM budget: double-buffered bf16 inputs + output, plus the f32 acc.
    out_isize = jnp.dtype(out_dtype).itemsize
    vmem_bytes = 2 * (tm * tk * 2 + tk * tn * 2 + tm * tn * out_isize) + tm * tn * 4
    vmem_limit = int(min(max(4 * vmem_bytes, 8 * 1024 * 1024), 32 * 1024 * 1024))

    cost = pl.CostEstimate(
        flops=2 * M * N * N,
        transcendentals=0,
        bytes_accessed=x_bf.size * 2 + rt_bf.size * 2 + M * N * out_isize,
    )

    out_t = pl.pallas_call(
        _mixing_kernel,
        out_shape=jax.ShapeDtypeStruct((M, N), out_dtype),
        grid_spec=pltpu.PrefetchScalarGridSpec(
            num_scalar_prefetch=0,
            grid=grid,
            in_specs=[
                pl.BlockSpec((tm, tk), lambda i, j, k: (i, k)),  # x_t tile
                pl.BlockSpec((tk, tn), lambda i, j, k: (k, j)),  # R^T tile
            ],
            out_specs=pl.BlockSpec((tm, tn), lambda i, j, k: (i, j)),
            scratch_shapes=[pltpu.VMEM((tm, tn), jnp.float32)],
        ),
        compiler_params=pltpu.CompilerParams(
            dimension_semantics=("parallel", "parallel", "arbitrary"),
            vmem_limit_bytes=vmem_limit,
        ),
        cost_estimate=cost,
    )(x_bf, rt_bf)

    # Undo the layout plumbing: (M, N) -> (B, C, N) -> (B, N, C) -> (B, H, W, C)
    return jnp.transpose(out_t.reshape(B, C, N), (0, 2, 1)).reshape(B, H, W, C)


def make_random_matrix(num_tokens, key):
    # Mirrors: torch.softmax(torch.rand(N, N), dim=-1)  (fixed, non-trainable)
    raw = jax.random.uniform(key, (num_tokens, num_tokens), dtype=jnp.float32)
    return jax.nn.softmax(raw, axis=-1)


if __name__ == "__main__":
    key = jax.random.PRNGKey(0)
    k_x, k_r = jax.random.split(key)

    B, H, W, C = 2, 16, 16, 32  # N = H*W = 256 tokens
    N = H * W

    x = jax.random.normal(k_x, (B, H, W, C), dtype=jnp.float32)
    R = make_random_matrix(N, k_r)

    out = jax.block_until_ready(random_mixing(x, R))
    assert out.shape == (B, H, W, C)

    # Reference with the same bf16 operand quantization (f32 accumulation),
    # matching the kernel's numerics.
    x_q = x.reshape(B, N, C).astype(jnp.bfloat16).astype(jnp.float32)
    r_q = R.astype(jnp.bfloat16).astype(jnp.float32)
    ref = jnp.einsum("mn,bnc->bmc", r_q, x_q).reshape(B, H, W, C)
    assert jnp.allclose(out, ref, atol=1e-2, rtol=1e-2), float(
        jnp.max(jnp.abs(out - ref))
    )

    print("KERNEL_OK")
</pallas_src>

<mosaic_0001>
module attributes {stable_mosaic.version = 11 : i64} {
  func.func @_mixing_kernel(%arg0: i32, %arg1: i32, %arg2: i32, %arg3: memref<64x256xbf16, #tpu.memory_space<vmem>>, %arg4: memref<256x256xbf16, #tpu.memory_space<vmem>>, %arg5: memref<64x256xf32, #tpu.memory_space<vmem>>, %arg6: memref<64x256xf32, #tpu.memory_space<vmem>>) attributes {dimension_semantics = [#tpu.dimension_semantics<parallel>, #tpu.dimension_semantics<parallel>, #tpu.dimension_semantics<arbitrary>], iteration_bounds = array<i64: 1, 1, 1>, scalar_prefetch = 0 : i64, scratch_operands = 1 : i64, tpu.core_type = #tpu.core_type<tc>, window_params = [{transform_indices = @transform_0, window_bounds = array<i64: 64, 256>}, {transform_indices = @transform_1, window_bounds = array<i64: 256, 256>}, {transform_indices = @transform_2, window_bounds = array<i64: 64, 256>}]} {
    %c0_i32 = arith.constant 0 : i32
    %0 = arith.cmpi eq, %arg2, %c0_i32 : i32
    %1 = arith.extui %0 : i1 to i32
    %c0_i32_0 = arith.constant 0 : i32
    %2 = arith.cmpi ne, %1, %c0_i32_0 : i32
    scf.if %2 {
      %cst_10 = arith.constant 0.000000e+00 : f32
      %12 = vector.broadcast %cst_10 : f32 to vector<64x256xf32>
      %c0_11 = arith.constant 0 : index
      %c0_12 = arith.constant 0 : index
      %13 = vector.load %arg6[%c0_11, %c0_12] : memref<64x256xf32, #tpu.memory_space<vmem>>, vector<64x256xf32>
      tpu.vector_store %arg6[%c0_11, %c0_12], %12 {strides = array<i32>} : memref<64x256xf32, #tpu.memory_space<vmem>>, vector<64x256xf32>,
    } else {
    }
    %c0 = arith.constant 0 : index
    %c0_1 = arith.constant 0 : index
    %3 = vector.load %arg6[%c0, %c0_1] : memref<64x256xf32, #tpu.memory_space<vmem>>, vector<64x256xf32>
    %c0_2 = arith.constant 0 : index
    %c0_3 = arith.constant 0 : index
    %4 = vector.load %arg3[%c0_2, %c0_3] : memref<64x256xbf16, #tpu.memory_space<vmem>>, vector<64x256xbf16>
    %c0_4 = arith.constant 0 : index
    %c0_5 = arith.constant 0 : index
    %5 = vector.load %arg4[%c0_4, %c0_5] : memref<256x256xbf16, #tpu.memory_space<vmem>>, vector<256x256xbf16>
    %cst = arith.constant dense<0.000000e+00> : vector<64x256xf32>
    %6 = tpu.matmul %4, %5, %cst {dimension_numbers = #tpu.dot_dimension_numbers<[1], [0], [0], [1], [0, 0, 1, 1], [], []>} : vector<64x256xbf16>, vector<256x256xbf16>, vector<64x256xf32> -> vector<64x256xf32>
    %7 = arith.addf %3, %6 : vector<64x256xf32>
    %c0_6 = arith.constant 0 : index
    %c0_7 = arith.constant 0 : index
    %8 = vector.load %arg6[%c0_6, %c0_7] : memref<64x256xf32, #tpu.memory_space<vmem>>, vector<64x256xf32>
    tpu.vector_store %arg6[%c0_6, %c0_7], %7 {strides = array<i32>} : memref<64x256xf32, #tpu.memory_space<vmem>>, vector<64x256xf32>,
    %c0_i32_8 = arith.constant 0 : i32
    %9 = arith.cmpi eq, %arg2, %c0_i32_8 : i32
    %10 = arith.extui %9 : i1 to i32
    %c0_i32_9 = arith.constant 0 : i32
    %11 = arith.cmpi ne, %10, %c0_i32_9 : i32
    scf.if %11 {
      %c0_10 = arith.constant 0 : index
      %c0_11 = arith.constant 0 : index
      %12 = vector.load %arg6[%c0_10, %c0_11] : memref<64x256xf32, #tpu.memory_space<vmem>>, vector<64x256xf32>
      %c0_12 = arith.constant 0 : index
      %c0_13 = arith.constant 0 : index
      %13 = vector.load %arg5[%c0_12, %c0_13] : memref<64x256xf32, #tpu.memory_space<vmem>>, vector<64x256xf32>
      tpu.vector_store %arg5[%c0_12, %c0_13], %12 {strides = array<i32>} : memref<64x256xf32, #tpu.memory_space<vmem>>, vector<64x256xf32>,
    } else {
    }
    return
  }
  func.func @transform_0(%arg0: i32, %arg1: i32, %arg2: i32) -> (i32, i32) {
    %c0_i32 = arith.constant 0 : i32
    return %arg0, %arg2 : i32, i32
  }
  func.func @transform_1(%arg0: i32, %arg1: i32, %arg2: i32) -> (i32, i32) {
    %c0_i32 = arith.constant 0 : i32
    return %arg2, %arg1 : i32, i32
  }
  func.func @transform_2(%arg0: i32, %arg1: i32, %arg2: i32) -> (i32, i32) {
    %c0_i32 = arith.constant 0 : i32
    return %arg0, %arg1 : i32, i32
  }
}

</mosaic_0001>

<llo_original>
// kernel: tpu_custom_call.1
$region0: #{tpu_custom_call.1}
  #allocation0 [shape = 'u32[]', space=smem, size = 0x4, offset = 0x4, fixed_abs, tag = 'smem constant byte address 0x4 - core index']
  #allocation1 [shape = 'u32[144,128]{1,0:T(1,128)}', space=vmem, size = 0x12000, scoped, tag = 'internal scratch']
  #allocation2 [shape = 'f32[64,256]{1,0:T(8,128)}', space=vmem, size = 0x10000, scoped, tag = 'scratch operand']
  %s0 = inlined_call_operand.hbm [shape: bf16[64,256], index: 0, kind: input, shape index: {}]
  %s1 = inlined_call_operand.hbm [shape: bf16[256,256], index: 1, kind: input, shape index: {}]
  %s2 = inlined_call_operand.hbm [shape: f32[64,256], index: 2, kind: output, shape index: {}]
  %s3 = sld [smem:[#allocation0]]
  $region34: #{tpu_custom_call.1} parent=0
    _
  %s5 = ssub.s32 1, %s3
  %s6 = scalar_select 0, %s5, %s3
  $region1: #{tpu_custom_call.1} parent=0
    #allocation3 [shape = 'u8[32768]{0}', space=vmem, size = 0x8000, scoped, tag = 'input window, operand 0, single buffered']
    #allocation4 [shape = 's32[1]{0}', space=sflag, size = 0x4, scoped, tag = 'scoped memory for tpu_custom_call.1']
    #allocation5 [shape = 's32[1]{0}', space=sflag, size = 0x4, scoped, tag = 'scoped memory for tpu_custom_call.1']
    #allocation6 [shape = 'u8[131072]{0}', space=vmem, size = 0x20000, scoped, tag = 'input window, operand 1, single buffered']
    #allocation7 [shape = 's32[1]{0}', space=sflag, size = 0x4, scoped, tag = 'scoped memory for tpu_custom_call.1']
    #allocation8 [shape = 'u8[65536]{0}', space=vmem, size = 0x10000, scoped, tag = 'output window, operand 0, single buffered']
    %7 = vsyncpa [#allocation4], 0
    %8 = vsyncpa [#allocation7], 0
    %9 = vsyncpa [#allocation5], 0
    // Predicated region
    $region2: #{tpu_custom_call.1} parent=1 // pred_check
      _
    $region3: #{tpu_custom_call.1} parent=1 // pred_check_branch
      %11 = sbr.rel (0) target = $region5
    $region4: #{tpu_custom_call.1} parent=1 // pred_region
      %s13 = ssub.s32 1024, 1024
      %14 = vsyncadd [#allocation4], %s13
      %s15 = sshll.u32 [#allocation3], 4
      %s16 = int_to_ptr.vmem [resolvable:$true] %s15
      %21 = dma.hbm_to_vmem [thread:$0]  %s0, 1024, %s16, [#allocation4], 128, 128, 8
    $region5: #{tpu_custom_call.1} parent=1 // pred_fallthru
      _
    // Predicated region
    $region6: #{tpu_custom_call.1} parent=1 // pred_check
      _
    $region7: #{tpu_custom_call.1} parent=1 // pred_check_branch
      %23 = sbr.rel (0) target = $region9
    $region8: #{tpu_custom_call.1} parent=1 // pred_region
      %s25 = ssub.s32 4096, 4096
      %26 = vsyncadd [#allocation7], %s25
      %s27 = sshll.u32 [#allocation6], 4
      %s28 = int_to_ptr.vmem [resolvable:$true] %s27
      %33 = dma.hbm_to_vmem [thread:$0]  %s1, 4096, %s28, [#allocation7], 128, 128, 8
    $region9: #{tpu_custom_call.1} parent=1 // pred_fallthru
      _
    // Predicated region
    $region10: #{tpu_custom_call.1} parent=1 // pred_check
      _
    $region11: #{tpu_custom_call.1} parent=1 // pred_check_branch
      %35 = sbr.rel (0) target = $region13
    $region12: #{tpu_custom_call.1} parent=1 // pred_region
      %36 = dma.done [#allocation4], 1024
    $region13: #{tpu_custom_call.1} parent=1 // pred_fallthru
      _
    // Predicated region
    $region14: #{tpu_custom_call.1} parent=1 // pred_check
      _
    $region15: #{tpu_custom_call.1} parent=1 // pred_check_branch
      %38 = sbr.rel (0) target = $region17
    $region16: #{tpu_custom_call.1} parent=1 // pred_region
      %39 = dma.done [#allocation7], 4096
    $region17: #{tpu_custom_call.1} parent=1 // pred_fallthru
      _
    %p40 = scmp.eq.s32.totalorder 0, 0
    // Predicated region
    $region18: #{tpu_custom_call.1} parent=1 // pred_check
      %p41 = pneg %p40
    $region19: #{tpu_custom_call.1} parent=1 // pred_check_branch
      %43 = sbr.rel (%p41) target = $region21
    $region20: #{tpu_custom_call.1} parent=1 // pred_region
      %44 = vst [vmem:[#allocation2] sm:$0xff] 0.0
      %45 = vst [vmem:[#allocation2 + $0x8] sm:$0xff] 0.0
      %46 = vst [vmem:[#allocation2 + $0x10] sm:$0xff] 0.0
      %47 = vst [vmem:[#allocation2 + $0x18] sm:$0xff] 0.0
      %48 = vst [vmem:[#allocation2 + $0x20] sm:$0xff] 0.0
      %49 = vst [vmem:[#allocation2 + $0x28] sm:$0xff] 0.0
      %50 = vst [vmem:[#allocation2 + $0x30] sm:$0xff] 0.0
      %51 = vst [vmem:[#allocation2 + $0x38] sm:$0xff] 0.0
      %52 = vst [vmem:[#allocation2 + $0x40] sm:$0xff] 0.0
      %53 = vst [vmem:[#allocation2 + $0x48] sm:$0xff] 0.0
      %54 = vst [vmem:[#allocation2 + $0x50] sm:$0xff] 0.0
      %55 = vst [vmem:[#allocation2 + $0x58] sm:$0xff] 0.0
      %56 = vst [vmem:[#allocation2 + $0x60] sm:$0xff] 0.0
      %57 = vst [vmem:[#allocation2 + $0x68] sm:$0xff] 0.0
      %58 = vst [vmem:[#allocation2 + $0x70] sm:$0xff] 0.0
      %59 = vst [vmem:[#allocation2 + $0x78] sm:$0xff] 0.0
    $region21: #{tpu_custom_call.1} parent=1 // pred_fallthru
      _
    %v60 = vld [vmem:[#allocation2] sm:$0xff]
    %v61 = vld [vmem:[#allocation2 + $0x8] sm:$0xff]
    %v62 = vld [vmem:[#allocation2 + $0x10] sm:$0xff]
    %v63 = vld [vmem:[#allocation2 + $0x18] sm:$0xff]
    %v64 = vld [vmem:[#allocation2 + $0x20] sm:$0xff]
    %v65 = vld [vmem:[#allocation2 + $0x28] sm:$0xff]
    %v66 = vld [vmem:[#allocation2 + $0x30] sm:$0xff]
    %v67 = vld [vmem:[#allocation2 + $0x38] sm:$0xff]
    %v68 = vld [vmem:[#allocation2 + $0x40] sm:$0xff]
    %v69 = vld [vmem:[#allocation2 + $0x48] sm:$0xff]
    %v70 = vld [vmem:[#allocation2 + $0x50] sm:$0xff]
    %v71 = vld [vmem:[#allocation2 + $0x58] sm:$0xff]
    %v72 = vld [vmem:[#allocation2 + $0x60] sm:$0xff]
    %v73 = vld [vmem:[#allocation2 + $0x68] sm:$0xff]
    %v74 = vld [vmem:[#allocation2 + $0x70] sm:$0xff]
    %v75 = vld [vmem:[#allocation2 + $0x78] sm:$0xff]
    %v76 = vld [vmem:[#allocation3] sm:$0xff]
    %v77 = vld [vmem:[#allocation3 + $0x8] sm:$0xff]
    %v78 = vld [vmem:[#allocation3 + $0x10] sm:$0xff]
    %v79 = vld [vmem:[#allocation3 + $0x18] sm:$0xff]
    %v80 = vld [vmem:[#allocation3 + $0x20] sm:$0xff]
    %v81 = vld [vmem:[#allocation3 + $0x28] sm:$0xff]
    %v82 = vld [vmem:[#allocation3 + $0x30] sm:$0xff]
    %v83 = vld [vmem:[#allocation3 + $0x38] sm:$0xff]
    %v84 = vld [vmem:[#allocation6] sm:$0xff]
    %v85 = vld [vmem:[#allocation6 + $0x8] sm:$0xff]
    %v86 = vld [vmem:[#allocation6 + $0x10] sm:$0xff]
    %v87 = vld [vmem:[#allocation6 + $0x18] sm:$0xff]
    %v88 = vld [vmem:[#allocation6 + $0x20] sm:$0xff]
    %v89 = vld [vmem:[#allocation6 + $0x28] sm:$0xff]
    %v90 = vld [vmem:[#allocation6 + $0x30] sm:$0xff]
    %v91 = vld [vmem:[#allocation6 + $0x38] sm:$0xff]
    %v92 = vld [vmem:[#allocation6 + $0x40] sm:$0xff]
    %v93 = vld [vmem:[#allocation6 + $0x48] sm:$0xff]
    %v94 = vld [vmem:[#allocation6 + $0x50] sm:$0xff]
    %v95 = vld [vmem:[#allocation6 + $0x58] sm:$0xff]
    %v96 = vld [vmem:[#allocation6 + $0x60] sm:$0xff]
    %v97 = vld [vmem:[#allocation6 + $0x68] sm:$0xff]
    %v98 = vld [vmem:[#allocation6 + $0x70] sm:$0xff]
    %v99 = vld [vmem:[#allocation6 + $0x78] sm:$0xff]
    %v100 = vld [vmem:[#allocation6 + $0x80] sm:$0xff]
    %v101 = vld [vmem:[#allocation6 + $0x88] sm:$0xff]
    %v102 = vld [vmem:[#allocation6 + $0x90] sm:$0xff]
    %v103 = vld [vmem:[#allocation6 + $0x98] sm:$0xff]
    %v104 = vld [vmem:[#allocation6 + $0xa0] sm:$0xff]
    %v105 = vld [vmem:[#allocation6 + $0xa8] sm:$0xff]
    %v106 = vld [vmem:[#allocation6 + $0xb0] sm:$0xff]
    %v107 = vld [vmem:[#allocation6 + $0xb8] sm:$0xff]
    %v108 = vld [vmem:[#allocation6 + $0xc0] sm:$0xff]
    %v109 = vld [vmem:[#allocation6 + $0xc8] sm:$0xff]
    %v110 = vld [vmem:[#allocation6 + $0xd0] sm:$0xff]
    %v111 = vld [vmem:[#allocation6 + $0xd8] sm:$0xff]
    %v112 = vld [vmem:[#allocation6 + $0xe0] sm:$0xff]
    %v113 = vld [vmem:[#allocation6 + $0xe8] sm:$0xff]
    %v114 = vld [vmem:[#allocation6 + $0xf0] sm:$0xff]
    %v115 = vld [vmem:[#allocation6 + $0xf8] sm:$0xff]
    %v124 = vunpack.c.l.b16 %v76
    %v125 = vunpack.c.h.b16 %v76
    %v126 = vunpack.c.l.b16 %v77
    %v127 = vunpack.c.h.b16 %v77
    %v128 = vunpack.c.l.b16 %v78
    %v129 = vunpack.c.h.b16 %v78
    %v130 = vunpack.c.l.b16 %v79
    %v131 = vunpack.c.h.b16 %v79
    %v132 = vunpack.c.l.b16 %v80
    %v133 = vunpack.c.h.b16 %v80
    %v134 = vunpack.c.l.b16 %v81
    %v135 = vunpack.c.h.b16 %v81
    %v136 = vunpack.c.l.b16 %v82
    %v137 = vunpack.c.h.b16 %v82
    %v138 = vunpack.c.l.b16 %v83
    %v139 = vunpack.c.h.b16 %v83
    %v140 = vpack.c.b16 %v126, %v124
    %v141 = vpack.c.b16 %v127, %v125
    %v142 = vpack.c.b16 %v130, %v128
    %v143 = vpack.c.b16 %v131, %v129
    %v144 = vpack.c.b16 %v134, %v132
    %v145 = vpack.c.b16 %v135, %v133
    %v146 = vpack.c.b16 %v138, %v136
    %v147 = vpack.c.b16 %v139, %v137
    %v188 = vunpack.c.l.b16 %v84
    %v189 = vunpack.c.h.b16 %v84
    %v190 = vunpack.c.l.b16 %v85
    %v191 = vunpack.c.h.b16 %v85
    %v192 = vunpack.c.l.b16 %v86
    %v193 = vunpack.c.h.b16 %v86
    %v194 = vunpack.c.l.b16 %v87
    %v195 = vunpack.c.h.b16 %v87
    %v196 = vunpack.c.l.b16 %v88
    %v197 = vunpack.c.h.b16 %v88
    %v198 = vunpack.c.l.b16 %v89
    %v199 = vunpack.c.h.b16 %v89
    %v200 = vunpack.c.l.b16 %v90
    %v201 = vunpack.c.h.b16 %v90
    %v202 = vunpack.c.l.b16 %v91
    %v203 = vunpack.c.h.b16 %v91
    %v204 = vunpack.c.l.b16 %v92
    %v205 = vunpack.c.h.b16 %v92
    %v206 = vunpack.c.l.b16 %v93
    %v207 = vunpack.c.h.b16 %v93
    %v208 = vunpack.c.l.b16 %v94
    %v209 = vunpack.c.h.b16 %v94
    %v210 = vunpack.c.l.b16 %v95
    %v211 = vunpack.c.h.b16 %v95
    %v212 = vunpack.c.l.b16 %v96
    %v213 = vunpack.c.h.b16 %v96
    %v214 = vunpack.c.l.b16 %v97
    %v215 = vunpack.c.h.b16 %v97
    %v216 = vunpack.c.l.b16 %v98
    %v217 = vunpack.c.h.b16 %v98
    %v218 = vunpack.c.l.b16 %v99
    %v219 = vunpack.c.h.b16 %v99
    %v220 = vunpack.c.l.b16 %v100
    %v221 = vunpack.c.h.b16 %v100
    %v222 = vunpack.c.l.b16 %v101
    %v223 = vunpack.c.h.b16 %v101
    %v224 = vunpack.c.l.b16 %v102
    %v225 = vunpack.c.h.b16 %v102
    %v226 = vunpack.c.l.b16 %v103
    %v227 = vunpack.c.h.b16 %v103
    %v228 = vunpack.c.l.b16 %v104
    %v229 = vunpack.c.h.b16 %v104
    %v230 = vunpack.c.l.b16 %v105
    %v231 = vunpack.c.h.b16 %v105
    %v232 = vunpack.c.l.b16 %v106
    %v233 = vunpack.c.h.b16 %v106
    %v234 = vunpack.c.l.b16 %v107
    %v235 = vunpack.c.h.b16 %v107
    %v236 = vunpack.c.l.b16 %v108
    %v237 = vunpack.c.h.b16 %v108
    %v238 = vunpack.c.l.b16 %v109
    %v239 = vunpack.c.h.b16 %v109
    %v240 = vunpack.c.l.b16 %v110
    %v241 = vunpack.c.h.b16 %v110
    %v242 = vunpack.c.l.b16 %v111
    %v243 = vunpack.c.h.b16 %v111
    %v244 = vunpack.c.l.b16 %v112
    %v245 = vunpack.c.h.b16 %v112
    %v246 = vunpack.c.l.b16 %v113
    %v247 = vunpack.c.h.b16 %v113
    %v248 = vunpack.c.l.b16 %v114
    %v249 = vunpack.c.h.b16 %v114
    %v250 = vunpack.c.l.b16 %v115
    %v251 = vunpack.c.h.b16 %v115
    %v252 = vpack.c.b16 %v190, %v188
    %v253 = vpack.c.b16 %v191, %v189
    %v254 = vpack.c.b16 %v194, %v192
    %v255 = vpack.c.b16 %v195, %v193
    %v256 = vpack.c.b16 %v198, %v196
    %v257 = vpack.c.b16 %v199, %v197
    %v258 = vpack.c.b16 %v202, %v200
    %v259 = vpack.c.b16 %v203, %v201
    %v260 = vpack.c.b16 %v206, %v204
    %v261 = vpack.c.b16 %v207, %v205
    %v262 = vpack.c.b16 %v210, %v208
    %v263 = vpack.c.b16 %v211, %v209
    %v264 = vpack.c.b16 %v214, %v212
    %v265 = vpack.c.b16 %v215, %v213
    %v266 = vpack.c.b16 %v218, %v216
    %v267 = vpack.c.b16 %v219, %v217
    %v268 = vpack.c.b16 %v222, %v220
    %v269 = vpack.c.b16 %v223, %v221
    %v270 = vpack.c.b16 %v226, %v224
    %v271 = vpack.c.b16 %v227, %v225
    %v272 = vpack.c.b16 %v230, %v228
    %v273 = vpack.c.b16 %v231, %v229
    %v274 = vpack.c.b16 %v234, %v232
    %v275 = vpack.c.b16 %v235, %v233
    %v276 = vpack.c.b16 %v238, %v236
    %v277 = vpack.c.b16 %v239, %v237
    %v278 = vpack.c.b16 %v242, %v240
    %v279 = vpack.c.b16 %v243, %v241
    %v280 = vpack.c.b16 %v246, %v244
    %v281 = vpack.c.b16 %v247, %v245
    %v282 = vpack.c.b16 %v250, %v248
    %v283 = vpack.c.b16 %v251, %v249
    %316 = vmatprep.subr.bf16.mxu0 %v253
    %317 = vmatpush1.bf16.msra.mxu0 %v252
    %318 = vmatprep.subr.bf16.mxu0 %v255
    %319 = vmatpush1.bf16.msra.mxu0 %v254
    %320 = vmatprep.subr.bf16.mxu0 %v257
    %321 = vmatpush1.bf16.msra.mxu0 %v256
    %322 = vmatprep.subr.bf16.mxu0 %v259
    %323 = vmatpush1.bf16.msra.mxu0 %v258
    %324 = vmatprep.subr.bf16.mxu0 %v261
    %325 = vmatpush1.bf16.msra.mxu0 %v260
    %326 = vmatprep.subr.bf16.mxu0 %v263
    %327 = vmatpush1.bf16.msra.mxu0 %v262
    %328 = vmatprep.subr.bf16.mxu0 %v265
    %329 = vmatpush1.bf16.msra.mxu0 %v264
    %330 = vmatprep.subr.bf16.mxu0 %v267
    %331 = vmatpush1.bf16.msra.mxu0 %v266
    %332 = vmatprep.subr.bf16.mxu0 %v269
    %333 = vmatpush1.bf16.msra.mxu0 %v268
    %334 = vmatprep.subr.bf16.mxu0 %v271
    %335 = vmatpush1.bf16.msra.mxu0 %v270
    %336 = vmatprep.subr.bf16.mxu0 %v273
    %337 = vmatpush1.bf16.msra.mxu0 %v272
    %338 = vmatprep.subr.bf16.mxu0 %v275
    %339 = vmatpush1.bf16.msra.mxu0 %v274
    %340 = vmatprep.subr.bf16.mxu0 %v277
    %341 = vmatpush1.bf16.msra.mxu0 %v276
    %342 = vmatprep.subr.bf16.mxu0 %v279
    %343 = vmatpush1.bf16.msra.mxu0 %v278
    %344 = vmatprep.subr.bf16.mxu0 %v281
    %345 = vmatpush1.bf16.msra.mxu0 %v280
    %346 = vmatprep.subr.bf16.mxu0 %v283
    %347 = vmatpush1.bf16.msra.mxu0 %v282
    %348 = vmatprep.mubr.bf16.mxu0 %v141
    %349 = vmatmul.mubr.bf16.gmra.mrb[0].mxu0 %v140
    %v350 = vpop.f32.mrb[0].mxu0
    %v351 = vadd.f32 0.0, %v350
    %v352 = vpop.f32.mrb[0].mxu0
    %v353 = vadd.f32 0.0, %v352
    %v354 = vpop.f32.mrb[0].mxu0
    %v355 = vadd.f32 0.0, %v354
    %v356 = vpop.f32.mrb[0].mxu0
    %v357 = vadd.f32 0.0, %v356
    %358 = vmatprep.mubr.bf16.mxu0 %v143
    %359 = vmatmul.mubr.bf16.gmra.mrb[0].mxu0 %v142
    %v360 = vpop.f32.mrb[0].mxu0
    %v361 = vadd.f32 0.0, %v360
    %v362 = vpop.f32.mrb[0].mxu0
    %v363 = vadd.f32 0.0, %v362
    %v364 = vpop.f32.mrb[0].mxu0
    %v365 = vadd.f32 0.0, %v364
    %v366 = vpop.f32.mrb[0].mxu0
    %v367 = vadd.f32 0.0, %v366
    %368 = vmatprep.mubr.bf16.mxu0 %v145
    %369 = vmatmul.mubr.bf16.gmra.mrb[0].mxu0 %v144
    %v370 = vpop.f32.mrb[0].mxu0
    %v371 = vadd.f32 0.0, %v370
    %v372 = vpop.f32.mrb[0].mxu0
    %v373 = vadd.f32 0.0, %v372
    %v374 = vpop.f32.mrb[0].mxu0
    %v375 = vadd.f32 0.0, %v374
    %v376 = vpop.f32.mrb[0].mxu0
    %v377 = vadd.f32 0.0, %v376
    %378 = vmatprep.mubr.bf16.mxu0 %v147
    %379 = vmatmul.mubr.bf16.gmra.mrb[0].mxu0 %v146
    %v380 = vpop.f32.mrb[0].mxu0
    %v381 = vadd.f32 0.0, %v380
    %v382 = vpop.f32.mrb[0].mxu0
    %v383 = vadd.f32 0.0, %v382
    %v384 = vpop.f32.mrb[0].mxu0
    %v385 = vadd.f32 0.0, %v384
    %v386 = vpop.f32.mrb[0].mxu0
    %v387 = vadd.f32 0.0, %v386
    %388 = vdwg.mxu0
    %v389 = vadd.f32 %v60, %v351
    %v390 = vadd.f32 %v61, %v353
    %v391 = vadd.f32 %v62, %v355
    %v392 = vadd.f32 %v63, %v357
    %v393 = vadd.f32 %v64, %v361
    %v394 = vadd.f32 %v65, %v363
    %v395 = vadd.f32 %v66, %v365
    %v396 = vadd.f32 %v67, %v367
    %v397 = vadd.f32 %v68, %v371
    %v398 = vadd.f32 %v69, %v373
    %v399 = vadd.f32 %v70, %v375
    %v400 = vadd.f32 %v71, %v377
    %v401 = vadd.f32 %v72, %v381
    %v402 = vadd.f32 %v73, %v383
    %v403 = vadd.f32 %v74, %v385
    %v404 = vadd.f32 %v75, %v387
    %405 = vst [vmem:[#allocation2] sm:$0xff] %v389
    %406 = vst [vmem:[#allocation2 + $0x8] sm:$0xff] %v390
    %407 = vst [vmem:[#allocation2 + $0x10] sm:$0xff] %v391
    %408 = vst [vmem:[#allocation2 + $0x18] sm:$0xff] %v392
    %409 = vst [vmem:[#allocation2 + $0x20] sm:$0xff] %v393
    %410 = vst [vmem:[#allocation2 + $0x28] sm:$0xff] %v394
    %411 = vst [vmem:[#allocation2 + $0x30] sm:$0xff] %v395
    %412 = vst [vmem:[#allocation2 + $0x38] sm:$0xff] %v396
    %413 = vst [vmem:[#allocation2 + $0x40] sm:$0xff] %v397
    %414 = vst [vmem:[#allocation2 + $0x48] sm:$0xff] %v398
    %415 = vst [vmem:[#allocation2 + $0x50] sm:$0xff] %v399
    %416 = vst [vmem:[#allocation2 + $0x58] sm:$0xff] %v400
    %417 = vst [vmem:[#allocation2 + $0x60] sm:$0xff] %v401
    %418 = vst [vmem:[#allocation2 + $0x68] sm:$0xff] %v402
    %419 = vst [vmem:[#allocation2 + $0x70] sm:$0xff] %v403
    %420 = vst [vmem:[#allocation2 + $0x78] sm:$0xff] %v404
    // Predicated region
    $region22: #{tpu_custom_call.1} parent=1 // pred_check
      %p421 = pneg %p40
    $region23: #{tpu_custom_call.1} parent=1 // pred_check_branch
      %423 = sbr.rel (%p421) target = $region25
    $region24: #{tpu_custom_call.1} parent=1 // pred_region
      %v424 = vld [vmem:[#allocation2] sm:$0xff]
      %v425 = vld [vmem:[#allocation2 + $0x8] sm:$0xff]
      %v426 = vld [vmem:[#allocation2 + $0x10] sm:$0xff]
      %v427 = vld [vmem:[#allocation2 + $0x18] sm:$0xff]
      %v428 = vld [vmem:[#allocation2 + $0x20] sm:$0xff]
      %v429 = vld [vmem:[#allocation2 + $0x28] sm:$0xff]
      %v430 = vld [vmem:[#allocation2 + $0x30] sm:$0xff]
      %v431 = vld [vmem:[#allocation2 + $0x38] sm:$0xff]
      %v432 = vld [vmem:[#allocation2 + $0x40] sm:$0xff]
      %v433 = vld [vmem:[#allocation2 + $0x48] sm:$0xff]
      %v434 = vld [vmem:[#allocation2 + $0x50] sm:$0xff]
      %v435 = vld [vmem:[#allocation2 + $0x58] sm:$0xff]
      %v436 = vld [vmem:[#allocation2 + $0x60] sm:$0xff]
      %v437 = vld [vmem:[#allocation2 + $0x68] sm:$0xff]
      %v438 = vld [vmem:[#allocation2 + $0x70] sm:$0xff]
      %v439 = vld [vmem:[#allocation2 + $0x78] sm:$0xff]
      %440 = vst [vmem:[#allocation8] sm:$0xff] %v424
      %441 = vst [vmem:[#allocation8 + $0x8] sm:$0xff] %v425
      %442 = vst [vmem:[#allocation8 + $0x10] sm:$0xff] %v426
      %443 = vst [vmem:[#allocation8 + $0x18] sm:$0xff] %v427
      %444 = vst [vmem:[#allocation8 + $0x20] sm:$0xff] %v428
      %445 = vst [vmem:[#allocation8 + $0x28] sm:$0xff] %v429
      %446 = vst [vmem:[#allocation8 + $0x30] sm:$0xff] %v430
      %447 = vst [vmem:[#allocation8 + $0x38] sm:$0xff] %v431
      %448 = vst [vmem:[#allocation8 + $0x40] sm:$0xff] %v432
      %449 = vst [vmem:[#allocation8 + $0x48] sm:$0xff] %v433
      %450 = vst [vmem:[#allocation8 + $0x50] sm:$0xff] %v434
      %451 = vst [vmem:[#allocation8 + $0x58] sm:$0xff] %v435
      %452 = vst [vmem:[#allocation8 + $0x60] sm:$0xff] %v436
      %453 = vst [vmem:[#allocation8 + $0x68] sm:$0xff] %v437
      %454 = vst [vmem:[#allocation8 + $0x70] sm:$0xff] %v438
      %455 = vst [vmem:[#allocation8 + $0x78] sm:$0xff] %v439
    $region25: #{tpu_custom_call.1} parent=1 // pred_fallthru
      _
    // Predicated region
    $region26: #{tpu_custom_call.1} parent=1 // pred_check
      _
    $region27: #{tpu_custom_call.1} parent=1 // pred_check_branch
      %457 = sbr.rel (0) target = $region29
    $region28: #{tpu_custom_call.1} parent=1 // pred_region
      %s459 = ssub.s32 2048, 2048
      %460 = vsyncadd [#allocation5], %s459
      %s461 = sshll.u32 [#allocation8], 4
      %s462 = int_to_ptr.vmem [resolvable:$true] %s461
      %467 = dma.vmem_to_hbm [thread:$0]  %s462, 2048, %s2, [#allocation5], 256, 256, 16
    $region29: #{tpu_custom_call.1} parent=1 // pred_fallthru
      _
    // Predicated region
    $region30: #{tpu_custom_call.1} parent=1 // pred_check
      _
    $region31: #{tpu_custom_call.1} parent=1 // pred_check_branch
      %469 = sbr.rel (0) target = $region33
    $region32: #{tpu_custom_call.1} parent=1 // pred_region
      %470 = dma.done [#allocation5], 2048
    $region33: #{tpu_custom_call.1} parent=1 // pred_fallthru
      _
    %471 = vsyncpa [#allocation4], 1
    %472 = vsyncpa [#allocation7], 1
    %473 = vsyncpa [#allocation5], 1

</llo_original>
